<compile_context>
chip_gen: v5e
topology: v5e:2x2
jax: 0.10.0
libtpu: 0.0.40
codegen_flags: <defaults>
</compile_context>

<pallas_src>
import functools

import jax
import jax.numpy as jnp
from jax.experimental import pallas as pl
from jax.experimental.pallas import tpu as pltpu

HIDDEN = 128          # fc1/fc2 width
LANE = 128            # TPU lane width; lane-dense logits/probs width
IN_PAD = 8            # w1 rows padded to one sublane group
BIAS_ROWS = 8         # bias rows padded to one sublane group
NEG_BIG = -1e30       # masks padded logit columns out of the softmax


def _round_up(x, m):
    return ((x + m - 1) // m) * m


def _policy_net_kernel(x_ref, w_ref, o_ref, *, input_dim):
    """One batch tile: fc1 -> relu -> fc2 -> relu -> fc3 -> softmax (lane-dense).

    x_ref : (tile_m, input_dim)                     raw input rows
    w_ref : (IN_PAD + 2*HIDDEN + BIAS_ROWS, 128)    single packed parameter slab
              rows [0, IN_PAD)              : w1 (input_dim real rows, rest 0)
              rows [IN_PAD, IN_PAD+128)     : w2
              rows [IN_PAD+128, IN_PAD+256) : w3 (output cols zero-padded to 128)
              row  IN_PAD+256               : b1
              row  IN_PAD+257               : b2
              row  IN_PAD+258               : b3, padded cols = -1e30 (softmax mask)
    o_ref : (tile_m, 128)   lane-dense probabilities (cols >= out_dim are exactly 0)
    """
    r1 = IN_PAD
    r2 = r1 + HIDDEN
    r3 = r2 + HIDDEN
    b1 = w_ref[r3 + 0:r3 + 1, :]
    b2 = w_ref[r3 + 1:r3 + 2, :]
    b3 = w_ref[r3 + 2:r3 + 3, :]   # also carries the -1e30 column mask

    x = x_ref[...]

    # fc1 + bias + ReLU  (K = input_dim; Mosaic pads internally)
    h1 = jnp.dot(x, w_ref[0:input_dim, :], preferred_element_type=jnp.float32)
    h1 = jnp.maximum(h1 + b1, 0.0)

    # fc2 + bias + ReLU
    h2 = jnp.dot(h1, w_ref[r1:r2, :], preferred_element_type=jnp.float32)
    h2 = jnp.maximum(h2 + b2, 0.0)

    # fc3: lane-dense 128-wide matmul; the b3 row both adds the real bias and
    # pushes padded columns to ~-1e30 so they vanish in the softmax.
    logits = jnp.dot(h2, w_ref[r2:r3, :], preferred_element_type=jnp.float32)
    logits = logits + b3

    # Numerically-stable softmax over the (masked) lane axis. Exact division:
    # rows sum to 1 to f32 rounding (pl.reciprocal(approx=True) was the bug).
    m = jnp.max(logits, axis=1, keepdims=True)
    e = jnp.exp(logits - m)                     # masked columns underflow to 0
    denom = jnp.sum(e, axis=1, keepdims=True)
    o_ref[...] = (e / denom).astype(o_ref.dtype)


def pack_params(params, input_dim, output_dim):
    """Pack (w1,b1,w2,b2,w3,b3) into one f32 slab of shape (272, 128).

    Weights are stored transposed vs. PyTorch: (in_features, out_features),
    so the kernel computes x @ W + b.
    """
    w1, b1, w2, b2, w3, b3 = params
    assert input_dim <= IN_PAD and output_dim <= LANE

    rows = IN_PAD + 2 * HIDDEN + BIAS_ROWS
    wpack = jnp.zeros((rows, LANE), jnp.float32)
    wpack = wpack.at[:input_dim, :].set(w1.astype(jnp.float32))
    wpack = wpack.at[IN_PAD:IN_PAD + HIDDEN, :].set(w2.astype(jnp.float32))
    wpack = wpack.at[IN_PAD + HIDDEN:IN_PAD + 2 * HIDDEN, :output_dim].set(
        w3.astype(jnp.float32))

    r3 = IN_PAD + 2 * HIDDEN
    wpack = wpack.at[r3 + 0, :].set(b1.reshape(-1).astype(jnp.float32))
    wpack = wpack.at[r3 + 1, :].set(b2.reshape(-1).astype(jnp.float32))
    b3_row = jnp.full((LANE,), NEG_BIG, jnp.float32)
    b3_row = b3_row.at[:output_dim].set(b3.reshape(-1).astype(jnp.float32))
    wpack = wpack.at[r3 + 2, :].set(b3_row)
    return wpack


def policy_net_forward(x, wpack, *, input_dim, output_dim, block_m=256):
    """x: (batch, input_dim) float32. Returns (batch, output_dim) probabilities."""
    batch = x.shape[0]

    # Big tiles amortize the ~0.35us/grid-step overhead; batches >= 2*block_m
    # still give >=2 "parallel" steps so v7x can split tiles across its 2 TCs.
    tile_m = min(block_m, _round_up(batch, 8))
    m_pad = _round_up(batch, tile_m)
    grid = (m_pad // tile_m,)

    x = x.astype(jnp.float32)
    if m_pad != batch:
        # Row-pad only the last tile; no K-axis augmentation, no extra
        # full-batch HBM round trip when the batch already tiles evenly.
        x = jnp.pad(x, ((0, m_pad - batch), (0, 0)))

    flops = 2 * m_pad * HIDDEN * (input_dim + HIDDEN + LANE)
    bytes_accessed = 4 * (m_pad * input_dim + wpack.size + m_pad * LANE)

    out = pl.pallas_call(
        functools.partial(_policy_net_kernel, input_dim=input_dim),
        out_shape=jax.ShapeDtypeStruct((m_pad, LANE), jnp.float32),
        grid=grid,
        in_specs=[
            # Last block dim == full array dim (input_dim) -> legal and DMA-cheap.
            pl.BlockSpec((tile_m, input_dim), lambda i: (i, 0)),
            # Constant block index: the parameter slab is DMA'd once and stays
            # VMEM-resident across all grid steps.
            pl.BlockSpec(wpack.shape, lambda i: (0, 0)),
        ],
        # Lane-dense output block: unmasked 128-wide stores.
        out_specs=pl.BlockSpec((tile_m, LANE), lambda i: (i, 0)),
        compiler_params=pltpu.CompilerParams(
            dimension_semantics=("parallel",)),   # batch tiles across TCs (v7x)
        cost_estimate=pl.CostEstimate(
            flops=flops,
            transcendentals=m_pad * LANE,
            bytes_accessed=bytes_accessed),
    )(x, wpack)
    return out[:batch, :output_dim]


def init_params(key, input_dim, output_dim, hidden=HIDDEN):
    """Deterministic synthetic parameters (PyTorch Linear init ranges, transposed)."""
    k1, k2, k3, k4, k5, k6 = jax.random.split(key, 6)
    s1 = 1.0 / jnp.sqrt(input_dim)
    s2 = 1.0 / jnp.sqrt(hidden)
    w1 = jax.random.uniform(k1, (input_dim, hidden), jnp.float32, -s1, s1)
    b1 = jax.random.uniform(k2, (1, hidden), jnp.float32, -s1, s1)
    w2 = jax.random.uniform(k3, (hidden, hidden), jnp.float32, -s2, s2)
    b2 = jax.random.uniform(k4, (1, hidden), jnp.float32, -s2, s2)
    w3 = jax.random.uniform(k5, (hidden, output_dim), jnp.float32, -s2, s2)
    b3 = jax.random.uniform(k6, (1, output_dim), jnp.float32, -s2, s2)
    return (w1, b1, w2, b2, w3, b3)


if __name__ == "__main__":
    # CartPole-like dims: input_dim=4 (state), output_dim=2 (actions).
    input_dim, output_dim = 4, 2

    key = jax.random.PRNGKey(0)
    pkey, xkey1, xkey2 = jax.random.split(key, 3)
    params = init_params(pkey, input_dim, output_dim)
    wpack = pack_params(params, input_dim, output_dim)

    def reference(xin):
        w1, b1, w2, b2, w3, b3 = params
        h1 = jnp.maximum(xin @ w1 + b1, 0.0)
        h2 = jnp.maximum(h1 @ w2 + b2, 0.0)
        return jax.nn.softmax(h2 @ w3 + b3, axis=1)

    # Rollout-sized batch: 512 states -> 2 parallel 256-row tiles.
    x_big = jax.random.normal(xkey1, (512, input_dim), jnp.float32)
    probs = jax.block_until_ready(
        policy_net_forward(x_big, wpack,
                           input_dim=input_dim, output_dim=output_dim))
    assert probs.shape == (512, output_dim)
    assert jnp.allclose(probs, reference(x_big), atol=1e-3, rtol=1e-3)
    assert jnp.allclose(jnp.sum(probs, axis=1), 1.0, atol=1e-5)

    # Small ragged batch exercises the row-padding path (single tiny tile).
    x_small = jax.random.normal(xkey2, (5, input_dim), jnp.float32)
    probs_small = jax.block_until_ready(
        policy_net_forward(x_small, wpack,
                           input_dim=input_dim, output_dim=output_dim))
    assert probs_small.shape == (5, output_dim)
    assert jnp.allclose(probs_small, reference(x_small), atol=1e-3, rtol=1e-3)
    assert jnp.allclose(jnp.sum(probs_small, axis=1), 1.0, atol=1e-5)

    # TODO(synk): Categorical sampling in policy_net.act() is not part of
    # forward(); sample on the host with jax.random.categorical on the probs.

    print("KERNEL_OK")
</pallas_src>

<mosaic_0001>
module attributes {stable_mosaic.version = 11 : i64} {
  func.func @_policy_net_kernel(%arg0: i32, %arg1: memref<256x4xf32, #tpu.memory_space<vmem>>, %arg2: memref<272x128xf32, #tpu.memory_space<vmem>>, %arg3: memref<256x128xf32, #tpu.memory_space<vmem>>) attributes {dimension_semantics = [#tpu.dimension_semantics<parallel>], iteration_bounds = array<i64: 2>, scalar_prefetch = 0 : i64, scratch_operands = 0 : i64, tpu.core_type = #tpu.core_type<tc>, window_params = [{transform_indices = @transform_0, window_bounds = array<i64: 256, 4>}, {pipeline_mode = #tpu.pipeline_mode<synchronous>, transform_indices = @transform_1, window_bounds = array<i64: 272, 128>}, {transform_indices = @transform_2, window_bounds = array<i64: 256, 128>}]} {
    %c264 = arith.constant 264 : index
    %c0 = arith.constant 0 : index
    %0 = vector.load %arg2[%c264, %c0] : memref<272x128xf32, #tpu.memory_space<vmem>>, vector<1x128xf32>
    %c265 = arith.constant 265 : index
    %c0_0 = arith.constant 0 : index
    %1 = vector.load %arg2[%c265, %c0_0] : memref<272x128xf32, #tpu.memory_space<vmem>>, vector<1x128xf32>
    %c266 = arith.constant 266 : index
    %c0_1 = arith.constant 0 : index
    %2 = vector.load %arg2[%c266, %c0_1] : memref<272x128xf32, #tpu.memory_space<vmem>>, vector<1x128xf32>
    %c0_2 = arith.constant 0 : index
    %c0_3 = arith.constant 0 : index
    %3 = vector.load %arg1[%c0_2, %c0_3] : memref<256x4xf32, #tpu.memory_space<vmem>>, vector<256x4xf32>
    %c0_4 = arith.constant 0 : index
    %c0_5 = arith.constant 0 : index
    %4 = vector.load %arg2[%c0_4, %c0_5] : memref<272x128xf32, #tpu.memory_space<vmem>>, vector<4x128xf32>
    %cst = arith.constant dense<0.000000e+00> : vector<256x128xf32>
    %5 = tpu.matmul %3, %4, %cst {dimension_numbers = #tpu.dot_dimension_numbers<[1], [0], [0], [1], [0, 0, 1, 1], [], []>} : vector<256x4xf32>, vector<4x128xf32>, vector<256x128xf32> -> vector<256x128xf32>
    %6 = vector.broadcast %0 : vector<1x128xf32> to vector<256x128xf32>
    %7 = arith.addf %5, %6 : vector<256x128xf32>
    %cst_6 = arith.constant 0.000000e+00 : f32
    %8 = vector.broadcast %cst_6 : f32 to vector<256x128xf32>
    %9 = arith.maximumf %7, %8 : vector<256x128xf32>
    %c8 = arith.constant 8 : index
    %c0_7 = arith.constant 0 : index
    %10 = vector.load %arg2[%c8, %c0_7] : memref<272x128xf32, #tpu.memory_space<vmem>>, vector<128x128xf32>
    %cst_8 = arith.constant dense<0.000000e+00> : vector<256x128xf32>
    %11 = tpu.matmul %9, %10, %cst_8 {dimension_numbers = #tpu.dot_dimension_numbers<[1], [0], [0], [1], [0, 0, 1, 1], [], []>} : vector<256x128xf32>, vector<128x128xf32>, vector<256x128xf32> -> vector<256x128xf32>
    %12 = vector.broadcast %1 : vector<1x128xf32> to vector<256x128xf32>
    %13 = arith.addf %11, %12 : vector<256x128xf32>
    %cst_9 = arith.constant 0.000000e+00 : f32
    %14 = vector.broadcast %cst_9 : f32 to vector<256x128xf32>
    %15 = arith.maximumf %13, %14 : vector<256x128xf32>
    %c136 = arith.constant 136 : index
    %c0_10 = arith.constant 0 : index
    %16 = vector.load %arg2[%c136, %c0_10] : memref<272x128xf32, #tpu.memory_space<vmem>>, vector<128x128xf32>
    %cst_11 = arith.constant dense<0.000000e+00> : vector<256x128xf32>
    %17 = tpu.matmul %15, %16, %cst_11 {dimension_numbers = #tpu.dot_dimension_numbers<[1], [0], [0], [1], [0, 0, 1, 1], [], []>} : vector<256x128xf32>, vector<128x128xf32>, vector<256x128xf32> -> vector<256x128xf32>
    %18 = vector.broadcast %2 : vector<1x128xf32> to vector<256x128xf32>
    %19 = arith.addf %17, %18 : vector<256x128xf32>
    %cst_12 = arith.constant dense<0xFF800000> : vector<256xf32>
    %20 = vector.multi_reduction <maximumf>, %19, %cst_12 [1] : vector<256x128xf32> to vector<256xf32>
    %21 = vector.shape_cast %20 : vector<256xf32> to vector<256x1xf32>
    %22 = vector.broadcast %21 : vector<256x1xf32> to vector<256x128xf32>
    %23 = arith.subf %19, %22 : vector<256x128xf32>
    %24 = math.exp %23 : vector<256x128xf32>
    %cst_13 = arith.constant dense<0.000000e+00> : vector<256xf32>
    %25 = vector.multi_reduction <add>, %24, %cst_13 [1] : vector<256x128xf32> to vector<256xf32>
    %26 = vector.shape_cast %25 : vector<256xf32> to vector<256x1xf32>
    %27 = vector.broadcast %26 : vector<256x1xf32> to vector<256x128xf32>
    %28 = arith.divf %24, %27 : vector<256x128xf32>
    %c0_14 = arith.constant 0 : index
    %c0_15 = arith.constant 0 : index
    %29 = vector.load %arg3[%c0_14, %c0_15] : memref<256x128xf32, #tpu.memory_space<vmem>>, vector<256x128xf32>
    tpu.vector_store %arg3[%c0_14, %c0_15], %28 {strides = array<i32>} : memref<256x128xf32, #tpu.memory_space<vmem>>, vector<256x128xf32>,
    return
  }
  func.func @transform_0(%arg0: i32) -> (i32, i32) {
    %c0_i32 = arith.constant 0 : i32
    %c0_i32_0 = arith.constant 0 : i32
    return %arg0, %c0_i32 : i32, i32
  }
  func.func @transform_1(%arg0: i32) -> (i32, i32) {
    %c0_i32 = arith.constant 0 : i32
    %c0_i32_0 = arith.constant 0 : i32
    %c0_i32_1 = arith.constant 0 : i32
    return %c0_i32, %c0_i32_0 : i32, i32
  }
  func.func @transform_2(%arg0: i32) -> (i32, i32) {
    %c0_i32 = arith.constant 0 : i32
    %c0_i32_0 = arith.constant 0 : i32
    return %arg0, %c0_i32 : i32, i32
  }
}

</mosaic_0001>

<llo_original>
// kernel: tpu_custom_call.1
$region0: #{tpu_custom_call.1}
  #allocation0 [shape = 'u32[]', space=smem, size = 0x4, offset = 0x4, fixed_abs, tag = 'smem constant byte address 0x4 - core index']
  #allocation1 [shape = 'u32[72,128]{1,0:T(1,128)}', space=vmem, size = 0x9000, scoped, tag = 'internal scratch']
  %s0 = inlined_call_operand.vmem [shape: f32[512,4], index: 0, kind: input, shape index: {}]
  %s1 = inlined_call_operand.vmem [shape: f32[272,128], index: 1, kind: input, shape index: {}]
  %s2 = inlined_call_operand.hbm [shape: f32[512,128], index: 2, kind: output, shape index: {}]
  %s3 = sld [smem:[#allocation0]]
  $region41: #{tpu_custom_call.1} parent=0
    _
  %s5 = ssub.s32 1, %s3
  %s6 = scalar_select 0, %s5, %s3
  $region1: #{tpu_custom_call.1} parent=0
    #allocation2 [shape = 'u8[262144]{0}', space=vmem, size = 0x40000, scoped, tag = 'output window, operand 0']
    #allocation3 [shape = 's32[2]{0}', space=sflag, size = 0x8, scoped, tag = 'scoped memory for tpu_custom_call.1']
    %7 = vsyncpa [#allocation3], 0
    %s8 = scalar_lea.sflag [#allocation3], 1
    %9 = vsyncpa %s8, 0
    loop: start=0, step=1, limit=4
    $region2: #{tpu_custom_call.1} parent=1 // loop_pre_header
      _
    $region3: #{tpu_custom_call.1} parent=1 // loop_header
      %s11 = sphi 0, %s15
      %p12 = scmp.ge.s32.totalorder %s11, 4
      %s21 = sphi 0, %s23
      %s24 = sphi 0, %s21
      %s25 = sphi 0, %s24
      %s41 = sphi 0, %s25
      %s45 = sphi 0, %s45
      %s47 = sphi 0, %s45
      %s48 = sphi 0, %s47
      %s62 = sphi 0, %s48
      %s68 = sphi 0, %s70
      %s71 = sphi 0, %s68
      %s72 = sphi 0, %s71
      %s88 = sphi 0, %s72
    $region4: #{tpu_custom_call.1} parent=1 // loop_header_branch
      %14 = sbr.rel (%p12) target = $region8
    $region5: #{tpu_custom_call.1} parent=1 // loop_body
      %s16 = ssub.s32 %s11, 1
      %s17 = ssub.s32 %s11, 2
      %s18 = sadd.s32 %s11, 1
      %s19 = ssub.s32 %s11, %s18
      %p20 = scmp.eq.s32.totalorder %s19, 0
      %s22 = sadd.s32 %s21, 1
      %s23 = scalar_select %p20, %s21, %s22
      %p26 = pneg %p20
      %p27 = scmp.eq.s32.totalorder %s11, 1
      %p28 = por %p26, %p27
      %p29 = scmp.ne.s32.totalorder %s21, %s24
      %p30 = scmp.eq.s32.totalorder %s11, 0
      %p31 = por %p29, %p30
      %p32 = scmp.ne.s32.totalorder %s21, %s24
      %p33 = scmp.eq.s32.totalorder %s16, 1
      %p34 = por %p32, %p33
      %p35 = scmp.ne.s32.totalorder %s24, %s25
      %p36 = scmp.eq.s32.totalorder %s16, 0
      %p37 = por %p35, %p36
      %p38 = scmp.ne.s32.totalorder %s24, %s25
      %p39 = scmp.eq.s32.totalorder %s17, 1
      %p40 = por %p38, %p39
      %p42 = scmp.ne.s32.totalorder %s25, %s41
      %p43 = scmp.eq.s32.totalorder %s17, 0
      %p44 = por %p42, %p43
      %s46 = sadd.s32 %s45, 1
      %p49 = scmp.eq.s32.totalorder %s11, 1
      %p50 = scmp.ne.s32.totalorder %s45, %s47
      %p51 = scmp.eq.s32.totalorder %s11, 0
      %p52 = por %p50, %p51
      %p53 = scmp.ne.s32.totalorder %s45, %s47
      %p54 = scmp.eq.s32.totalorder %s16, 1
      %p55 = por %p53, %p54
      %p56 = scmp.ne.s32.totalorder %s47, %s48
      %p57 = scmp.eq.s32.totalorder %s16, 0
      %p58 = por %p56, %p57
      %p59 = scmp.ne.s32.totalorder %s47, %s48
      %p60 = scmp.eq.s32.totalorder %s17, 1
      %p61 = por %p59, %p60
      %p63 = scmp.ne.s32.totalorder %s48, %s62
      %p64 = scmp.eq.s32.totalorder %s17, 0
      %p65 = por %p63, %p64
      %s66 = ssub.s32 %s11, %s18
      %p67 = scmp.eq.s32.totalorder %s66, 0
      %s69 = sadd.s32 %s68, 1
      %s70 = scalar_select %p67, %s68, %s69
      %p73 = pneg %p67
      %p74 = scmp.eq.s32.totalorder %s11, 1
      %p75 = por %p73, %p74
      %p76 = scmp.ne.s32.totalorder %s68, %s71
      %p77 = scmp.eq.s32.totalorder %s11, 0
      %p78 = por %p76, %p77
      %p79 = scmp.ne.s32.totalorder %s68, %s71
      %p80 = scmp.eq.s32.totalorder %s16, 1
      %p81 = por %p79, %p80
      %p82 = scmp.ne.s32.totalorder %s71, %s72
      %p83 = scmp.eq.s32.totalorder %s16, 0
      %p84 = por %p82, %p83
      %p85 = scmp.ne.s32.totalorder %s71, %s72
      %p86 = scmp.eq.s32.totalorder %s17, 1
      %p87 = por %p85, %p86
      %p89 = scmp.ne.s32.totalorder %s72, %s88
      %p90 = scmp.eq.s32.totalorder %s17, 0
      %p91 = por %p89, %p90
      %p92 = scmp.le.s32.totalorder 1, %s11
      %p93 = scmp.lt.s32.totalorder %s11, 3
      %p94 = pnand %p92, %p93
      %p95 = pneg %p94
      // Predicated region
      $region9: #{tpu_custom_call.1} parent=5 // pred_check
        _
      $region10: #{tpu_custom_call.1} parent=5 // pred_check_branch
        %97 = sbr.rel (%p94) target = $region12
      $region11: #{tpu_custom_call.1} parent=5 // pred_region
        %s98 = ssub.s32 %s11, 1
        // Predicated region
        $region13: #{tpu_custom_call.1} parent=11 // pred_check
          %p99 = pneg %p58
        $region14: #{tpu_custom_call.1} parent=11 // pred_check_branch
          %101 = sbr.rel (%p99) target = $region16
        $region15: #{tpu_custom_call.1} parent=11 // pred_region
          _
        $region16: #{tpu_custom_call.1} parent=11 // pred_fallthru
          _
      $region12: #{tpu_custom_call.1} parent=5 // pred_fallthru
        _
      %p102 = scmp.lt.s32.totalorder %s11, 2
      // Predicated region
      $region17: #{tpu_custom_call.1} parent=5 // pred_check
        %p103 = pneg %p102
      $region18: #{tpu_custom_call.1} parent=5 // pred_check_branch
        %105 = sbr.rel (%p103) target = $region20
      $region19: #{tpu_custom_call.1} parent=5 // pred_region
        // Predicated region
        $region21: #{tpu_custom_call.1} parent=19 // pred_check
          %p106 = pneg %p31
        $region22: #{tpu_custom_call.1} parent=19 // pred_check_branch
          %108 = sbr.rel (%p106) target = $region24
        $region23: #{tpu_custom_call.1} parent=19 // pred_region
          %s109 = smul.u32 32, %s11
          %p110 = scmp.lt.s32.totalorder %s109, 63
          %s111 = scalar_select %p110, %s109, 63
          %s112 = smul.addr %s111, 8
          %s113 = scalar_lea.vmem %s0, %s112
          %s114 = smul.u32 32, %s11
        $region24: #{tpu_custom_call.1} parent=19 // pred_fallthru
          _
      $region20: #{tpu_custom_call.1} parent=5 // pred_fallthru
        _
      %p115 = scmp.le.s32.totalorder 1, %s11
      %p116 = scmp.lt.s32.totalorder %s11, 3
      %p117 = pnand %p115, %p116
      %p118 = pneg %p117
      // Predicated region
      $region25: #{tpu_custom_call.1} parent=5 // pred_check
        _
      $region26: #{tpu_custom_call.1} parent=5 // pred_check_branch
        %120 = sbr.rel (%p117) target = $region28
      $region27: #{tpu_custom_call.1} parent=5 // pred_region
        %s121 = ssub.s32 %s11, 1
        %s122 = smul.u32 32, %s16
        %p123 = scmp.lt.s32.totalorder %s122, 63
        %s124 = scalar_select %p123, %s122, 63
        %s125 = smul.addr %s124, 8
        %s126 = scalar_lea.vmem %s0, %s125
        %p127 = pneg %p37
        %p128 = pneg %p34
        %p129 = pneg %p58
        %p130 = pneg %p55
        %p131 = pneg %p84
        %p132 = pneg %p81
        %s133 = sand.u32 %s71, 1
        %s134 = scalar_lea.sflag [#allocation3], %s133
        %s135 = sand.u32 %s71, 1
        %s136 = smul.addr %s135, 256
        %s137 = scalar_lea.vmem [#allocation2], %s136
        %s138 = smul.u32 32, %s16
        %p139 = scmp.lt.s32.totalorder %s138, 63
        %s140 = scalar_select %p139, %s138, 63
        %s141 = smul.addr %s140, 8
        %s142 = scalar_lea.vmem %s0, %s141
        %s143 = smul.u32 32, %s16
        %s144 = smul.u32 32, %s16
        %v145 = vld [vmem:[%s1 + $0x108] sm:$0x1]
        %v146 = vld [vmem:[%s1 + $0x109] sm:$0x1]
        %v147 = vld [vmem:[%s1 + $0x10a] sm:$0x1]
        %v148 = vld [vmem:[%s142] sm:$0xff]
        %v149 = vld [vmem:[%s142 + $0x8] sm:$0xff]
        %v150 = vld [vmem:[%s142 + $0x10] sm:$0xff]
        %v151 = vld [vmem:[%s142 + $0x18] sm:$0xff]
        %v152 = vld [vmem:[%s142 + $0x20] sm:$0xff]
        %v153 = vld [vmem:[%s142 + $0x28] sm:$0xff]
        %v154 = vld [vmem:[%s142 + $0x30] sm:$0xff]
        %v155 = vld [vmem:[%s142 + $0x38] sm:$0xff]
        %v156 = vld [vmem:[%s142 + $0x40] sm:$0xff]
        %v157 = vld [vmem:[%s142 + $0x48] sm:$0xff]
        %v158 = vld [vmem:[%s142 + $0x50] sm:$0xff]
        %v159 = vld [vmem:[%s142 + $0x58] sm:$0xff]
        %v160 = vld [vmem:[%s142 + $0x60] sm:$0xff]
        %v161 = vld [vmem:[%s142 + $0x68] sm:$0xff]
        %v162 = vld [vmem:[%s142 + $0x70] sm:$0xff]
        %v163 = vld [vmem:[%s142 + $0x78] sm:$0xff]
        %v164 = vld [vmem:[%s142 + $0x80] sm:$0xff]
        %v165 = vld [vmem:[%s142 + $0x88] sm:$0xff]
        %v166 = vld [vmem:[%s142 + $0x90] sm:$0xff]
        %v167 = vld [vmem:[%s142 + $0x98] sm:$0xff]
        %v168 = vld [vmem:[%s142 + $0xa0] sm:$0xff]
        %v169 = vld [vmem:[%s142 + $0xa8] sm:$0xff]
        %v170 = vld [vmem:[%s142 + $0xb0] sm:$0xff]
        %v171 = vld [vmem:[%s142 + $0xb8] sm:$0xff]
        %v172 = vld [vmem:[%s142 + $0xc0] sm:$0xff]
        %v173 = vld [vmem:[%s142 + $0xc8] sm:$0xff]
        %v174 = vld [vmem:[%s142 + $0xd0] sm:$0xff]
        %v175 = vld [vmem:[%s142 + $0xd8] sm:$0xff]
        %v176 = vld [vmem:[%s142 + $0xe0] sm:$0xff]
        %v177 = vld [vmem:[%s142 + $0xe8] sm:$0xff]
        %v178 = vld [vmem:[%s142 + $0xf0] sm:$0xff]
        %v179 = vld [vmem:[%s142 + $0xf8] sm:$0xff]
        %v180 = vld [vmem:[%s1] sm:$0xf]
        %v181 = vperm.slane %v145, 0
        %vm182 = vcmask 31744
        %v184 = vsel %vm182, %v148, 0
        %v187 = vsel %vm182, %v149, 0
        %v190 = vsel %vm182, %v150, 0
        %v193 = vsel %vm182, %v151, 0
        %v196 = vsel %vm182, %v152, 0
        %v199 = vsel %vm182, %v153, 0
        %v202 = vsel %vm182, %v154, 0
        %v205 = vsel %vm182, %v155, 0
        %v208 = vsel %vm182, %v156, 0
        %v211 = vsel %vm182, %v157, 0
        %v214 = vsel %vm182, %v158, 0
        %v217 = vsel %vm182, %v159, 0
        %v220 = vsel %vm182, %v160, 0
        %v223 = vsel %vm182, %v161, 0
        %v226 = vsel %vm182, %v162, 0
        %v229 = vsel %vm182, %v163, 0
        %v232 = vsel %vm182, %v164, 0
        %v235 = vsel %vm182, %v165, 0
        %v238 = vsel %vm182, %v166, 0
        %v241 = vsel %vm182, %v167, 0
        %v244 = vsel %vm182, %v168, 0
        %v247 = vsel %vm182, %v169, 0
        %v250 = vsel %vm182, %v170, 0
        %v253 = vsel %vm182, %v171, 0
        %v256 = vsel %vm182, %v172, 0
        %v259 = vsel %vm182, %v173, 0
        %v262 = vsel %vm182, %v174, 0
        %v265 = vsel %vm182, %v175, 0
        %v268 = vsel %vm182, %v176, 0
        %v271 = vsel %vm182, %v177, 0
        %v274 = vsel %vm182, %v178, 0
        %v277 = vsel %vm182, %v179, 0
        %vm279 = vcmask 1043456
        %v281 = vsel %vm279, %v180, 0
        %283 = vmatpush.msra.mxu0 0.0
        %284 = vmatpush.msra.mxu0 0.0
        %285 = vmatpush.msra.mxu0 0.0
        %286 = vmatpush.msra.mxu0 0.0
        %287 = vmatpush.msra.mxu0 0.0
        %288 = vmatpush.msra.mxu0 0.0
        %289 = vmatpush.msra.mxu0 0.0
        %290 = vmatpush.msra.mxu0 0.0
        %291 = vmatpush.msra.mxu0 0.0
        %292 = vmatpush.msra.mxu0 0.0
        %293 = vmatpush.msra.mxu0 0.0
        %294 = vmatpush.msra.mxu0 0.0
        %295 = vmatpush.msra.mxu0 0.0
        %296 = vmatpush.msra.mxu0 0.0
        %297 = vmatpush.msra.mxu0 0.0
        %298 = vmatpush.msra.mxu0 %v281
        %299 = vmatmul.f32.gmra.mxu0 %v184
        %v300 = vpop.f32.mrf.mxu0
        %v301 = vadd.f32 %v181, %v300
        %302 = vmatmul.f32.gmra.mxu0 %v187
        %v303 = vpop.f32.mrf.mxu0
        %v304 = vadd.f32 %v181, %v303
        %305 = vmatmul.f32.gmra.mxu0 %v190
        %v306 = vpop.f32.mrf.mxu0
        %v307 = vadd.f32 %v181, %v306
        %308 = vmatmul.f32.gmra.mxu0 %v193
        %v309 = vpop.f32.mrf.mxu0
        %v310 = vadd.f32 %v181, %v309
        %311 = vmatmul.f32.gmra.mxu0 %v196
        %v312 = vpop.f32.mrf.mxu0
        %v313 = vadd.f32 %v181, %v312
        %314 = vmatmul.f32.gmra.mxu0 %v199
        %v315 = vpop.f32.mrf.mxu0
        %v316 = vadd.f32 %v181, %v315
        %317 = vmatmul.f32.gmra.mxu0 %v202
        %v318 = vpop.f32.mrf.mxu0
        %v319 = vadd.f32 %v181, %v318
        %320 = vmatmul.f32.gmra.mxu0 %v205
        %v321 = vpop.f32.mrf.mxu0
        %v322 = vadd.f32 %v181, %v321
        %323 = vmatmul.f32.gmra.mxu0 %v208
        %v324 = vpop.f32.mrf.mxu0
        %v325 = vadd.f32 %v181, %v324
        %326 = vmatmul.f32.gmra.mxu0 %v211
        %v327 = vpop.f32.mrf.mxu0
        %v328 = vadd.f32 %v181, %v327
        %329 = vmatmul.f32.gmra.mxu0 %v214
        %v330 = vpop.f32.mrf.mxu0
        %v331 = vadd.f32 %v181, %v330
        %332 = vmatmul.f32.gmra.mxu0 %v217
        %v333 = vpop.f32.mrf.mxu0
        %v334 = vadd.f32 %v181, %v333
        %335 = vmatmul.f32.gmra.mxu0 %v220
        %v336 = vpop.f32.mrf.mxu0
        %v337 = vadd.f32 %v181, %v336
        %338 = vmatmul.f32.gmra.mxu0 %v223
        %v339 = vpop.f32.mrf.mxu0
        %v340 = vadd.f32 %v181, %v339
        %341 = vmatmul.f32.gmra.mxu0 %v226
        %v342 = vpop.f32.mrf.mxu0
        %v343 = vadd.f32 %v181, %v342
        %344 = vmatmul.f32.gmra.mxu0 %v229
        %v345 = vpop.f32.mrf.mxu0
        %v346 = vadd.f32 %v181, %v345
        %347 = vmatmul.f32.gmra.mxu0 %v232
        %v348 = vpop.f32.mrf.mxu0
        %v349 = vadd.f32 %v181, %v348
        %350 = vmatmul.f32.gmra.mxu0 %v235
        %v351 = vpop.f32.mrf.mxu0
        %v352 = vadd.f32 %v181, %v351
        %353 = vmatmul.f32.gmra.mxu0 %v238
        %v354 = vpop.f32.mrf.mxu0
        %v355 = vadd.f32 %v181, %v354
        %356 = vmatmul.f32.gmra.mxu0 %v241
        %v357 = vpop.f32.mrf.mxu0
        %v358 = vadd.f32 %v181, %v357
        %359 = vmatmul.f32.gmra.mxu0 %v244
        %v360 = vpop.f32.mrf.mxu0
        %v361 = vadd.f32 %v181, %v360
        %362 = vmatmul.f32.gmra.mxu0 %v247
        %v363 = vpop.f32.mrf.mxu0
        %v364 = vadd.f32 %v181, %v363
        %365 = vmatmul.f32.gmra.mxu0 %v250
        %v366 = vpop.f32.mrf.mxu0
        %v367 = vadd.f32 %v181, %v366
        %368 = vmatmul.f32.gmra.mxu0 %v253
        %v369 = vpop.f32.mrf.mxu0
        %v370 = vadd.f32 %v181, %v369
        %371 = vmatmul.f32.gmra.mxu0 %v256
        %v372 = vpop.f32.mrf.mxu0
        %v373 = vadd.f32 %v181, %v372
        %374 = vmatmul.f32.gmra.mxu0 %v259
        %v375 = vpop.f32.mrf.mxu0
        %v376 = vadd.f32 %v181, %v375
        %377 = vmatmul.f32.gmra.mxu0 %v262
        %v378 = vpop.f32.mrf.mxu0
        %v379 = vadd.f32 %v181, %v378
        %380 = vmatmul.f32.gmra.mxu0 %v265
        %v381 = vpop.f32.mrf.mxu0
        %v382 = vadd.f32 %v181, %v381
        %383 = vmatmul.f32.gmra.mxu0 %v268
        %v384 = vpop.f32.mrf.mxu0
        %v385 = vadd.f32 %v181, %v384
        %386 = vmatmul.f32.gmra.mxu0 %v271
        %v387 = vpop.f32.mrf.mxu0
        %v388 = vadd.f32 %v181, %v387
        %389 = vmatmul.f32.gmra.mxu0 %v274
        %v390 = vpop.f32.mrf.mxu0
        %v391 = vadd.f32 %v181, %v390
        %392 = vmatmul.f32.gmra.mxu0 %v277
        %v393 = vpop.f32.mrf.mxu0
        %v394 = vadd.f32 %v181, %v393
        %395 = vdwg.mxu0
        %v396 = vmax.f32 %v301, 0.0
        %v397 = vmax.f32 %v304, 0.0
        %v398 = vmax.f32 %v307, 0.0
        %v399 = vmax.f32 %v310, 0.0
        %v400 = vmax.f32 %v313, 0.0
        %v401 = vmax.f32 %v316, 0.0
        %v402 = vmax.f32 %v319, 0.0
        %v403 = vmax.f32 %v322, 0.0
        %v404 = vmax.f32 %v325, 0.0
        %v405 = vmax.f32 %v328, 0.0
        %v406 = vmax.f32 %v331, 0.0
        %v407 = vmax.f32 %v334, 0.0
        %v408 = vmax.f32 %v337, 0.0
        %v409 = vmax.f32 %v340, 0.0
        %v410 = vmax.f32 %v343, 0.0
        %v411 = vmax.f32 %v346, 0.0
        %v412 = vmax.f32 %v349, 0.0
        %v413 = vmax.f32 %v352, 0.0
        %v414 = vmax.f32 %v355, 0.0
        %v415 = vmax.f32 %v358, 0.0
        %v416 = vmax.f32 %v361, 0.0
        %v417 = vmax.f32 %v364, 0.0
        %v418 = vmax.f32 %v367, 0.0
        %v419 = vmax.f32 %v370, 0.0
        %v420 = vmax.f32 %v373, 0.0
        %v421 = vmax.f32 %v376, 0.0
        %v422 = vmax.f32 %v379, 0.0
        %v423 = vmax.f32 %v382, 0.0
        %v424 = vmax.f32 %v385, 0.0
        %v425 = vmax.f32 %v388, 0.0
        %v426 = vmax.f32 %v391, 0.0
        %v427 = vmax.f32 %v394, 0.0
        %v428 = vld [vmem:[%s1 + $0x8] sm:$0xff]
        %v429 = vld [vmem:[%s1 + $0x10] sm:$0xff]
        %v430 = vld [vmem:[%s1 + $0x18] sm:$0xff]
        %v431 = vld [vmem:[%s1 + $0x20] sm:$0xff]
        %v432 = vld [vmem:[%s1 + $0x28] sm:$0xff]
        %v433 = vld [vmem:[%s1 + $0x30] sm:$0xff]
        %v434 = vld [vmem:[%s1 + $0x38] sm:$0xff]
        %v435 = vld [vmem:[%s1 + $0x40] sm:$0xff]
        %v436 = vld [vmem:[%s1 + $0x48] sm:$0xff]
        %v437 = vld [vmem:[%s1 + $0x50] sm:$0xff]
        %v438 = vld [vmem:[%s1 + $0x58] sm:$0xff]
        %v439 = vld [vmem:[%s1 + $0x60] sm:$0xff]
        %v440 = vld [vmem:[%s1 + $0x68] sm:$0xff]
        %v441 = vld [vmem:[%s1 + $0x70] sm:$0xff]
        %v442 = vld [vmem:[%s1 + $0x78] sm:$0xff]
        %v443 = vld [vmem:[%s1 + $0x80] sm:$0xff]
        %v444 = vperm.slane %v146, 0
        %445 = vmatpush.msra.mxu0 %v443
        %446 = vmatpush.msra.mxu0 %v442
        %447 = vmatpush.msra.mxu0 %v441
        %448 = vmatpush.msra.mxu0 %v440
        %449 = vmatpush.msra.mxu0 %v439
        %450 = vmatpush.msra.mxu0 %v438
        %451 = vmatpush.msra.mxu0 %v437
        %452 = vmatpush.msra.mxu0 %v436
        %453 = vmatpush.msra.mxu0 %v435
        %454 = vmatpush.msra.mxu0 %v434
        %455 = vmatpush.msra.mxu0 %v433
        %456 = vmatpush.msra.mxu0 %v432
        %457 = vmatpush.msra.mxu0 %v431
        %458 = vmatpush.msra.mxu0 %v430
        %459 = vmatpush.msra.mxu0 %v429
        %460 = vmatpush.msra.mxu0 %v428
        %461 = vmatmul.f32.gmra.mxu0 %v396
        %v462 = vpop.f32.mrf.mxu0
        %v463 = vadd.f32 %v444, %v462
        %464 = vmatmul.f32.gmra.mxu0 %v397
        %v465 = vpop.f32.mrf.mxu0
        %v466 = vadd.f32 %v444, %v465
        %467 = vmatmul.f32.gmra.mxu0 %v398
        %v468 = vpop.f32.mrf.mxu0
        %v469 = vadd.f32 %v444, %v468
        %470 = vmatmul.f32.gmra.mxu0 %v399
        %v471 = vpop.f32.mrf.mxu0
        %v472 = vadd.f32 %v444, %v471
        %473 = vmatmul.f32.gmra.mxu0 %v400
        %v474 = vpop.f32.mrf.mxu0
        %v475 = vadd.f32 %v444, %v474
        %476 = vmatmul.f32.gmra.mxu0 %v401
        %v477 = vpop.f32.mrf.mxu0
        %v478 = vadd.f32 %v444, %v477
        %479 = vmatmul.f32.gmra.mxu0 %v402
        %v480 = vpop.f32.mrf.mxu0
        %v481 = vadd.f32 %v444, %v480
        %482 = vmatmul.f32.gmra.mxu0 %v403
        %v483 = vpop.f32.mrf.mxu0
        %v484 = vadd.f32 %v444, %v483
        %485 = vmatmul.f32.gmra.mxu0 %v404
        %v486 = vpop.f32.mrf.mxu0
        %v487 = vadd.f32 %v444, %v486
        %488 = vmatmul.f32.gmra.mxu0 %v405
        %v489 = vpop.f32.mrf.mxu0
        %v490 = vadd.f32 %v444, %v489
        %491 = vmatmul.f32.gmra.mxu0 %v406
        %v492 = vpop.f32.mrf.mxu0
        %v493 = vadd.f32 %v444, %v492
        %494 = vmatmul.f32.gmra.mxu0 %v407
        %v495 = vpop.f32.mrf.mxu0
        %v496 = vadd.f32 %v444, %v495
        %497 = vmatmul.f32.gmra.mxu0 %v408
        %v498 = vpop.f32.mrf.mxu0
        %v499 = vadd.f32 %v444, %v498
        %500 = vmatmul.f32.gmra.mxu0 %v409
        %v501 = vpop.f32.mrf.mxu0
        %v502 = vadd.f32 %v444, %v501
        %503 = vmatmul.f32.gmra.mxu0 %v410
        %v504 = vpop.f32.mrf.mxu0
        %v505 = vadd.f32 %v444, %v504
        %506 = vmatmul.f32.gmra.mxu0 %v411
        %v507 = vpop.f32.mrf.mxu0
        %v508 = vadd.f32 %v444, %v507
        %509 = vmatmul.f32.gmra.mxu0 %v412
        %v510 = vpop.f32.mrf.mxu0
        %v511 = vadd.f32 %v444, %v510
        %512 = vmatmul.f32.gmra.mxu0 %v413
        %v513 = vpop.f32.mrf.mxu0
        %v514 = vadd.f32 %v444, %v513
        %515 = vmatmul.f32.gmra.mxu0 %v414
        %v516 = vpop.f32.mrf.mxu0
        %v517 = vadd.f32 %v444, %v516
        %518 = vmatmul.f32.gmra.mxu0 %v415
        %v519 = vpop.f32.mrf.mxu0
        %v520 = vadd.f32 %v444, %v519
        %521 = vmatmul.f32.gmra.mxu0 %v416
        %v522 = vpop.f32.mrf.mxu0
        %v523 = vadd.f32 %v444, %v522
        %524 = vmatmul.f32.gmra.mxu0 %v417
        %v525 = vpop.f32.mrf.mxu0
        %v526 = vadd.f32 %v444, %v525
        %527 = vmatmul.f32.gmra.mxu0 %v418
        %v528 = vpop.f32.mrf.mxu0
        %v529 = vadd.f32 %v444, %v528
        %530 = vmatmul.f32.gmra.mxu0 %v419
        %v531 = vpop.f32.mrf.mxu0
        %v532 = vadd.f32 %v444, %v531
        %533 = vmatmul.f32.gmra.mxu0 %v420
        %v534 = vpop.f32.mrf.mxu0
        %v535 = vadd.f32 %v444, %v534
        %536 = vmatmul.f32.gmra.mxu0 %v421
        %v537 = vpop.f32.mrf.mxu0
        %v538 = vadd.f32 %v444, %v537
        %539 = vmatmul.f32.gmra.mxu0 %v422
        %v540 = vpop.f32.mrf.mxu0
        %v541 = vadd.f32 %v444, %v540
        %542 = vmatmul.f32.gmra.mxu0 %v423
        %v543 = vpop.f32.mrf.mxu0
        %v544 = vadd.f32 %v444, %v543
        %545 = vmatmul.f32.gmra.mxu0 %v424
        %v546 = vpop.f32.mrf.mxu0
        %v547 = vadd.f32 %v444, %v546
        %548 = vmatmul.f32.gmra.mxu0 %v425
        %v549 = vpop.f32.mrf.mxu0
        %v550 = vadd.f32 %v444, %v549
        %551 = vmatmul.f32.gmra.mxu0 %v426
        %v552 = vpop.f32.mrf.mxu0
        %v553 = vadd.f32 %v444, %v552
        %554 = vmatmul.f32.gmra.mxu0 %v427
        %v555 = vpop.f32.mrf.mxu0
        %v556 = vadd.f32 %v444, %v555
        %557 = vdwg.mxu0
        %v558 = vmax.f32 %v463, 0.0
        %v559 = vmax.f32 %v466, 0.0
        %v560 = vmax.f32 %v469, 0.0
        %v561 = vmax.f32 %v472, 0.0
        %v562 = vmax.f32 %v475, 0.0
        %v563 = vmax.f32 %v478, 0.0
        %v564 = vmax.f32 %v481, 0.0
        %v565 = vmax.f32 %v484, 0.0
        %v566 = vmax.f32 %v487, 0.0
        %v567 = vmax.f32 %v490, 0.0
        %v568 = vmax.f32 %v493, 0.0
        %v569 = vmax.f32 %v496, 0.0
        %v570 = vmax.f32 %v499, 0.0
        %v571 = vmax.f32 %v502, 0.0
        %v572 = vmax.f32 %v505, 0.0
        %v573 = vmax.f32 %v508, 0.0
        %v574 = vmax.f32 %v511, 0.0
        %v575 = vmax.f32 %v514, 0.0
        %v576 = vmax.f32 %v517, 0.0
        %v577 = vmax.f32 %v520, 0.0
        %v578 = vmax.f32 %v523, 0.0
        %v579 = vmax.f32 %v526, 0.0
        %v580 = vmax.f32 %v529, 0.0
        %v581 = vmax.f32 %v532, 0.0
        %v582 = vmax.f32 %v535, 0.0
        %v583 = vmax.f32 %v538, 0.0
        %v584 = vmax.f32 %v541, 0.0
        %v585 = vmax.f32 %v544, 0.0
        %v586 = vmax.f32 %v547, 0.0
        %v587 = vmax.f32 %v550, 0.0
        %v588 = vmax.f32 %v553, 0.0
        %v589 = vmax.f32 %v556, 0.0
        %v590 = vld [vmem:[%s1 + $0x88] sm:$0xff]
        %v591 = vld [vmem:[%s1 + $0x90] sm:$0xff]
        %v592 = vld [vmem:[%s1 + $0x98] sm:$0xff]
        %v593 = vld [vmem:[%s1 + $0xa0] sm:$0xff]
        %v594 = vld [vmem:[%s1 + $0xa8] sm:$0xff]
        %v595 = vld [vmem:[%s1 + $0xb0] sm:$0xff]
        %v596 = vld [vmem:[%s1 + $0xb8] sm:$0xff]
        %v597 = vld [vmem:[%s1 + $0xc0] sm:$0xff]
        %v598 = vld [vmem:[%s1 + $0xc8] sm:$0xff]
        %v599 = vld [vmem:[%s1 + $0xd0] sm:$0xff]
        %v600 = vld [vmem:[%s1 + $0xd8] sm:$0xff]
        %v601 = vld [vmem:[%s1 + $0xe0] sm:$0xff]
        %v602 = vld [vmem:[%s1 + $0xe8] sm:$0xff]
        %v603 = vld [vmem:[%s1 + $0xf0] sm:$0xff]
        %v604 = vld [vmem:[%s1 + $0xf8] sm:$0xff]
        %v605 = vld [vmem:[%s1 + $0x100] sm:$0xff]
        %v606 = vperm.slane %v147, 0
        %607 = vmatpush.msra.mxu0 %v605
        %608 = vmatpush.msra.mxu0 %v604
        %609 = vmatpush.msra.mxu0 %v603
        %610 = vmatpush.msra.mxu0 %v602
        %611 = vmatpush.msra.mxu0 %v601
        %612 = vmatpush.msra.mxu0 %v600
        %613 = vmatpush.msra.mxu0 %v599
        %614 = vmatpush.msra.mxu0 %v598
        %615 = vmatpush.msra.mxu0 %v597
        %616 = vmatpush.msra.mxu0 %v596
        %617 = vmatpush.msra.mxu0 %v595
        %618 = vmatpush.msra.mxu0 %v594
        %619 = vmatpush.msra.mxu0 %v593
        %620 = vmatpush.msra.mxu0 %v592
        %621 = vmatpush.msra.mxu0 %v591
        %622 = vmatpush.msra.mxu0 %v590
        %623 = vmatmul.f32.gmra.mxu0 %v558
        %v624 = vpop.f32.mrf.mxu0
        %v625 = vadd.f32 %v606, %v624
        %626 = vmatmul.f32.gmra.mxu0 %v559
        %v627 = vpop.f32.mrf.mxu0
        %v628 = vadd.f32 %v606, %v627
        %629 = vmatmul.f32.gmra.mxu0 %v560
        %v630 = vpop.f32.mrf.mxu0
        %v631 = vadd.f32 %v606, %v630
        %632 = vmatmul.f32.gmra.mxu0 %v561
        %v633 = vpop.f32.mrf.mxu0
        %v634 = vadd.f32 %v606, %v633
        %635 = vmatmul.f32.gmra.mxu0 %v562
        %v636 = vpop.f32.mrf.mxu0
        %v637 = vadd.f32 %v606, %v636
        %638 = vmatmul.f32.gmra.mxu0 %v563
        %v639 = vpop.f32.mrf.mxu0
        %v640 = vadd.f32 %v606, %v639
        %641 = vmatmul.f32.gmra.mxu0 %v564
        %v642 = vpop.f32.mrf.mxu0
        %v643 = vadd.f32 %v606, %v642
        %644 = vmatmul.f32.gmra.mxu0 %v565
        %v645 = vpop.f32.mrf.mxu0
        %v646 = vadd.f32 %v606, %v645
        %647 = vmatmul.f32.gmra.mxu0 %v566
        %v648 = vpop.f32.mrf.mxu0
        %v649 = vadd.f32 %v606, %v648
        %650 = vmatmul.f32.gmra.mxu0 %v567
        %v651 = vpop.f32.mrf.mxu0
        %v652 = vadd.f32 %v606, %v651
        %653 = vmatmul.f32.gmra.mxu0 %v568
        %v654 = vpop.f32.mrf.mxu0
        %v655 = vadd.f32 %v606, %v654
        %656 = vmatmul.f32.gmra.mxu0 %v569
        %v657 = vpop.f32.mrf.mxu0
        %v658 = vadd.f32 %v606, %v657
        %659 = vmatmul.f32.gmra.mxu0 %v570
        %v660 = vpop.f32.mrf.mxu0
        %v661 = vadd.f32 %v606, %v660
        %662 = vmatmul.f32.gmra.mxu0 %v571
        %v663 = vpop.f32.mrf.mxu0
        %v664 = vadd.f32 %v606, %v663
        %665 = vmatmul.f32.gmra.mxu0 %v572
        %v666 = vpop.f32.mrf.mxu0
        %v667 = vadd.f32 %v606, %v666
        %668 = vmatmul.f32.gmra.mxu0 %v573
        %v669 = vpop.f32.mrf.mxu0
        %v670 = vadd.f32 %v606, %v669
        %671 = vmatmul.f32.gmra.mxu0 %v574
        %v672 = vpop.f32.mrf.mxu0
        %v673 = vadd.f32 %v606, %v672
        %674 = vmatmul.f32.gmra.mxu0 %v575
        %v675 = vpop.f32.mrf.mxu0
        %v676 = vadd.f32 %v606, %v675
        %677 = vmatmul.f32.gmra.mxu0 %v576
        %v678 = vpop.f32.mrf.mxu0
        %v679 = vadd.f32 %v606, %v678
        %680 = vmatmul.f32.gmra.mxu0 %v577
        %v681 = vpop.f32.mrf.mxu0
        %v682 = vadd.f32 %v606, %v681
        %683 = vmatmul.f32.gmra.mxu0 %v578
        %v684 = vpop.f32.mrf.mxu0
        %v685 = vadd.f32 %v606, %v684
        %686 = vmatmul.f32.gmra.mxu0 %v579
        %v687 = vpop.f32.mrf.mxu0
        %v688 = vadd.f32 %v606, %v687
        %689 = vmatmul.f32.gmra.mxu0 %v580
        %v690 = vpop.f32.mrf.mxu0
        %v691 = vadd.f32 %v606, %v690
        %692 = vmatmul.f32.gmra.mxu0 %v581
        %v693 = vpop.f32.mrf.mxu0
        %v694 = vadd.f32 %v606, %v693
        %695 = vmatmul.f32.gmra.mxu0 %v582
        %v696 = vpop.f32.mrf.mxu0
        %v697 = vadd.f32 %v606, %v696
        %698 = vmatmul.f32.gmra.mxu0 %v583
        %v699 = vpop.f32.mrf.mxu0
        %v700 = vadd.f32 %v606, %v699
        %701 = vmatmul.f32.gmra.mxu0 %v584
        %v702 = vpop.f32.mrf.mxu0
        %v703 = vadd.f32 %v606, %v702
        %704 = vmatmul.f32.gmra.mxu0 %v585
        %v705 = vpop.f32.mrf.mxu0
        %v706 = vadd.f32 %v606, %v705
        %707 = vmatmul.f32.gmra.mxu0 %v586
        %v708 = vpop.f32.mrf.mxu0
        %v709 = vadd.f32 %v606, %v708
        %710 = vmatmul.f32.gmra.mxu0 %v587
        %v711 = vpop.f32.mrf.mxu0
        %v712 = vadd.f32 %v606, %v711
        %713 = vmatmul.f32.gmra.mxu0 %v588
        %v714 = vpop.f32.mrf.mxu0
        %v715 = vadd.f32 %v606, %v714
        %716 = vmatmul.f32.gmra.mxu0 %v589
        %v717 = vpop.f32.mrf.mxu0
        %v718 = vadd.f32 %v606, %v717
        %719 = vdwg.mxu0
        %720 = vmax.xlane.f32.xlu0 %v625
        %v721 = vpop.xlane.xlu0 %720
        %722 = vmax.xlane.f32.xlu0 %v628
        %v723 = vpop.xlane.xlu0 %722
        %724 = vmax.xlane.f32.xlu0 %v631
        %v725 = vpop.xlane.xlu0 %724
        %726 = vmax.xlane.f32.xlu0 %v634
        %v727 = vpop.xlane.xlu0 %726
        %728 = vmax.xlane.f32.xlu0 %v637
        %v729 = vpop.xlane.xlu0 %728
        %730 = vmax.xlane.f32.xlu0 %v640
        %v731 = vpop.xlane.xlu0 %730
        %732 = vmax.xlane.f32.xlu0 %v643
        %v733 = vpop.xlane.xlu0 %732
        %734 = vmax.xlane.f32.xlu0 %v646
        %v735 = vpop.xlane.xlu0 %734
        %736 = vmax.xlane.f32.xlu0 %v649
        %v737 = vpop.xlane.xlu0 %736
        %738 = vmax.xlane.f32.xlu0 %v652
        %v739 = vpop.xlane.xlu0 %738
        %740 = vmax.xlane.f32.xlu0 %v655
        %v741 = vpop.xlane.xlu0 %740
        %742 = vmax.xlane.f32.xlu0 %v658
        %v743 = vpop.xlane.xlu0 %742
        %744 = vmax.xlane.f32.xlu0 %v661
        %v745 = vpop.xlane.xlu0 %744
        %746 = vmax.xlane.f32.xlu0 %v664
        %v747 = vpop.xlane.xlu0 %746
        %748 = vmax.xlane.f32.xlu0 %v667
        %v749 = vpop.xlane.xlu0 %748
        %750 = vmax.xlane.f32.xlu0 %v670
        %v751 = vpop.xlane.xlu0 %750
        %752 = vmax.xlane.f32.xlu0 %v673
        %v753 = vpop.xlane.xlu0 %752
        %754 = vmax.xlane.f32.xlu0 %v676
        %v755 = vpop.xlane.xlu0 %754
        %756 = vmax.xlane.f32.xlu0 %v679
        %v757 = vpop.xlane.xlu0 %756
        %758 = vmax.xlane.f32.xlu0 %v682
        %v759 = vpop.xlane.xlu0 %758
        %760 = vmax.xlane.f32.xlu0 %v685
        %v761 = vpop.xlane.xlu0 %760
        %762 = vmax.xlane.f32.xlu0 %v688
        %v763 = vpop.xlane.xlu0 %762
        %764 = vmax.xlane.f32.xlu0 %v691
        %v765 = vpop.xlane.xlu0 %764
        %766 = vmax.xlane.f32.xlu0 %v694
        %v767 = vpop.xlane.xlu0 %766
        %768 = vmax.xlane.f32.xlu0 %v697
        %v769 = vpop.xlane.xlu0 %768
        %770 = vmax.xlane.f32.xlu0 %v700
        %v771 = vpop.xlane.xlu0 %770
        %772 = vmax.xlane.f32.xlu0 %v703
        %v773 = vpop.xlane.xlu0 %772
        %774 = vmax.xlane.f32.xlu0 %v706
        %v775 = vpop.xlane.xlu0 %774
        %776 = vmax.xlane.f32.xlu0 %v709
        %v777 = vpop.xlane.xlu0 %776
        %778 = vmax.xlane.f32.xlu0 %v712
        %v779 = vpop.xlane.xlu0 %778
        %780 = vmax.xlane.f32.xlu0 %v715
        %v781 = vpop.xlane.xlu0 %780
        %782 = vmax.xlane.f32.xlu0 %v718
        %v783 = vpop.xlane.xlu0 %782
        %v784 = vsub.f32 %v625, %v721
        %v785 = vsub.f32 %v628, %v723
        %v786 = vsub.f32 %v631, %v725
        %v787 = vsub.f32 %v634, %v727
        %v788 = vsub.f32 %v637, %v729
        %v789 = vsub.f32 %v640, %v731
        %v790 = vsub.f32 %v643, %v733
        %v791 = vsub.f32 %v646, %v735
        %v792 = vsub.f32 %v649, %v737
        %v793 = vsub.f32 %v652, %v739
        %v794 = vsub.f32 %v655, %v741
        %v795 = vsub.f32 %v658, %v743
        %v796 = vsub.f32 %v661, %v745
        %v797 = vsub.f32 %v664, %v747
        %v798 = vsub.f32 %v667, %v749
        %v799 = vsub.f32 %v670, %v751
        %v800 = vsub.f32 %v673, %v753
        %v801 = vsub.f32 %v676, %v755
        %v802 = vsub.f32 %v679, %v757
        %v803 = vsub.f32 %v682, %v759
        %v804 = vsub.f32 %v685, %v761
        %v805 = vsub.f32 %v688, %v763
        %v806 = vsub.f32 %v691, %v765
        %v807 = vsub.f32 %v694, %v767
        %v808 = vsub.f32 %v697, %v769
        %v809 = vsub.f32 %v700, %v771
        %v810 = vsub.f32 %v703, %v773
        %v811 = vsub.f32 %v706, %v775
        %v812 = vsub.f32 %v709, %v777
        %v813 = vsub.f32 %v712, %v779
        %v814 = vsub.f32 %v715, %v781
        %v815 = vsub.f32 %v718, %v783
        %v816 = vmul.f32 %v784, 1.442695
        %v817 = vpow.pop %v816
        %v818 = vmul.f32 %v785, 1.442695
        %v819 = vpow.pop %v818
        %v820 = vmul.f32 %v786, 1.442695
        %v821 = vpow.pop %v820
        %v822 = vmul.f32 %v787, 1.442695
        %v823 = vpow.pop %v822
        %v824 = vmul.f32 %v788, 1.442695
        %v825 = vpow.pop %v824
        %v826 = vmul.f32 %v789, 1.442695
        %v827 = vpow.pop %v826
        %v828 = vmul.f32 %v790, 1.442695
        %v829 = vpow.pop %v828
        %v830 = vmul.f32 %v791, 1.442695
        %v831 = vpow.pop %v830
        %v832 = vmul.f32 %v792, 1.442695
        %v833 = vpow.pop %v832
        %v834 = vmul.f32 %v793, 1.442695
        %v835 = vpow.pop %v834
        %v836 = vmul.f32 %v794, 1.442695
        %v837 = vpow.pop %v836
        %v838 = vmul.f32 %v795, 1.442695
        %v839 = vpow.pop %v838
        %v840 = vmul.f32 %v796, 1.442695
        %v841 = vpow.pop %v840
        %v842 = vmul.f32 %v797, 1.442695
        %v843 = vpow.pop %v842
        %v844 = vmul.f32 %v798, 1.442695
        %v845 = vpow.pop %v844
        %v846 = vmul.f32 %v799, 1.442695
        %v847 = vpow.pop %v846
        %v848 = vmul.f32 %v800, 1.442695
        %v849 = vpow.pop %v848
        %v850 = vmul.f32 %v801, 1.442695
        %v851 = vpow.pop %v850
        %v852 = vmul.f32 %v802, 1.442695
        %v853 = vpow.pop %v852
        %v854 = vmul.f32 %v803, 1.442695
        %v855 = vpow.pop %v854
        %v856 = vmul.f32 %v804, 1.442695
        %v857 = vpow.pop %v856
        %v858 = vmul.f32 %v805, 1.442695
        %v859 = vpow.pop %v858
        %v860 = vmul.f32 %v806, 1.442695
        %v861 = vpow.pop %v860
        %v862 = vmul.f32 %v807, 1.442695
        %v863 = vpow.pop %v862
        %v864 = vmul.f32 %v808, 1.442695
        %v865 = vpow.pop %v864
        %v866 = vmul.f32 %v809, 1.442695
        %v867 = vpow.pop %v866
        %v868 = vmul.f32 %v810, 1.442695
        %v869 = vpow.pop %v868
        %v870 = vmul.f32 %v811, 1.442695
        %v871 = vpow.pop %v870
        %v872 = vmul.f32 %v812, 1.442695
        %v873 = vpow.pop %v872
        %v874 = vmul.f32 %v813, 1.442695
        %v875 = vpow.pop %v874
        %v876 = vmul.f32 %v814, 1.442695
        %v877 = vpow.pop %v876
        %v878 = vmul.f32 %v815, 1.442695
        %v879 = vpow.pop %v878
        %880 = vadd.xlane.f32.xlu0 %v817
        %v881 = vpop.xlane.xlu0 %880
        %882 = vadd.xlane.f32.xlu0 %v819
        %v883 = vpop.xlane.xlu0 %882
        %884 = vadd.xlane.f32.xlu0 %v821
        %v885 = vpop.xlane.xlu0 %884
        %886 = vadd.xlane.f32.xlu0 %v823
        %v887 = vpop.xlane.xlu0 %886
        %888 = vadd.xlane.f32.xlu0 %v825
        %v889 = vpop.xlane.xlu0 %888
        %890 = vadd.xlane.f32.xlu0 %v827
        %v891 = vpop.xlane.xlu0 %890
        %892 = vadd.xlane.f32.xlu0 %v829
        %v893 = vpop.xlane.xlu0 %892
        %894 = vadd.xlane.f32.xlu0 %v831
        %v895 = vpop.xlane.xlu0 %894
        %896 = vadd.xlane.f32.xlu0 %v833
        %v897 = vpop.xlane.xlu0 %896
        %898 = vadd.xlane.f32.xlu0 %v835
        %v899 = vpop.xlane.xlu0 %898
        %900 = vadd.xlane.f32.xlu0 %v837
        %v901 = vpop.xlane.xlu0 %900
        %902 = vadd.xlane.f32.xlu0 %v839
        %v903 = vpop.xlane.xlu0 %902
        %904 = vadd.xlane.f32.xlu0 %v841
        %v905 = vpop.xlane.xlu0 %904
        %906 = vadd.xlane.f32.xlu0 %v843
        %v907 = vpop.xlane.xlu0 %906
        %908 = vadd.xlane.f32.xlu0 %v845
        %v909 = vpop.xlane.xlu0 %908
        %910 = vadd.xlane.f32.xlu0 %v847
        %v911 = vpop.xlane.xlu0 %910
        %912 = vadd.xlane.f32.xlu0 %v849
        %v913 = vpop.xlane.xlu0 %912
        %914 = vadd.xlane.f32.xlu0 %v851
        %v915 = vpop.xlane.xlu0 %914
        %916 = vadd.xlane.f32.xlu0 %v853
        %v917 = vpop.xlane.xlu0 %916
        %918 = vadd.xlane.f32.xlu0 %v855
        %v919 = vpop.xlane.xlu0 %918
        %920 = vadd.xlane.f32.xlu0 %v857
        %v921 = vpop.xlane.xlu0 %920
        %922 = vadd.xlane.f32.xlu0 %v859
        %v923 = vpop.xlane.xlu0 %922
        %924 = vadd.xlane.f32.xlu0 %v861
        %v925 = vpop.xlane.xlu0 %924
        %926 = vadd.xlane.f32.xlu0 %v863
        %v927 = vpop.xlane.xlu0 %926
        %928 = vadd.xlane.f32.xlu0 %v865
        %v929 = vpop.xlane.xlu0 %928
        %930 = vadd.xlane.f32.xlu0 %v867
        %v931 = vpop.xlane.xlu0 %930
        %932 = vadd.xlane.f32.xlu0 %v869
        %v933 = vpop.xlane.xlu0 %932
        %934 = vadd.xlane.f32.xlu0 %v871
        %v935 = vpop.xlane.xlu0 %934
        %936 = vadd.xlane.f32.xlu0 %v873
        %v937 = vpop.xlane.xlu0 %936
        %938 = vadd.xlane.f32.xlu0 %v875
        %v939 = vpop.xlane.xlu0 %938
        %940 = vadd.xlane.f32.xlu0 %v877
        %v941 = vpop.xlane.xlu0 %940
        %942 = vadd.xlane.f32.xlu0 %v879
        %v943 = vpop.xlane.xlu0 %942
        %v944 = vrcp.pop %v881
        %v945 = vmul.f32 %v881, %v944
        %v946 = vsub.f32 1.0, %v945
        %v947 = vmul.f32 %v944, %v946
        %v948 = vadd.f32 %v944, %v947
        %vm949 = vweird.f32 %v881
        %vm950 = vweird.f32 %v944
        %vm951 = vmor %vm949, %vm950
        %v952 = vsel %vm951, %v944, %v948
        %v953 = vand.u32 2147483647, %v881
        %vm954 = vcmp.eq.f32.partialorder %v953, 8.507059e+37
        %v955 = vand.u32 %v881, 2147483648
        %v956 = vor.u32 1.1754944e-38, %v955
        %v957 = vsel %vm954, %v956, %v952
        %v958 = vmul.f32 %v817, %v957
        %v959 = vrcp.pop %v883
        %v960 = vmul.f32 %v883, %v959
        %v961 = vsub.f32 1.0, %v960
        %v962 = vmul.f32 %v959, %v961
        %v963 = vadd.f32 %v959, %v962
        %vm964 = vweird.f32 %v883
        %vm965 = vweird.f32 %v959
        %vm966 = vmor %vm964, %vm965
        %v967 = vsel %vm966, %v959, %v963
        %v968 = vand.u32 2147483647, %v883
        %vm969 = vcmp.eq.f32.partialorder %v968, 8.507059e+37
        %v970 = vand.u32 %v883, 2147483648
        %v971 = vor.u32 1.1754944e-38, %v970
        %v972 = vsel %vm969, %v971, %v967
        %v973 = vmul.f32 %v819, %v972
        %v974 = vrcp.pop %v885
        %v975 = vmul.f32 %v885, %v974
        %v976 = vsub.f32 1.0, %v975
        %v977 = vmul.f32 %v974, %v976
        %v978 = vadd.f32 %v974, %v977
        %vm979 = vweird.f32 %v885
        %vm980 = vweird.f32 %v974
        %vm981 = vmor %vm979, %vm980
        %v982 = vsel %vm981, %v974, %v978
        %v983 = vand.u32 2147483647, %v885
        %vm984 = vcmp.eq.f32.partialorder %v983, 8.507059e+37
        %v985 = vand.u32 %v885, 2147483648
        %v986 = vor.u32 1.1754944e-38, %v985
        %v987 = vsel %vm984, %v986, %v982
        %v988 = vmul.f32 %v821, %v987
        %v989 = vrcp.pop %v887
        %v990 = vmul.f32 %v887, %v989
        %v991 = vsub.f32 1.0, %v990
        %v992 = vmul.f32 %v989, %v991
        %v993 = vadd.f32 %v989, %v992
        %vm994 = vweird.f32 %v887
        %vm995 = vweird.f32 %v989
        %vm996 = vmor %vm994, %vm995
        %v997 = vsel %vm996, %v989, %v993
        %v998 = vand.u32 2147483647, %v887
        %vm999 = vcmp.eq.f32.partialorder %v998, 8.507059e+37
        %v1000 = vand.u32 %v887, 2147483648
        %v1001 = vor.u32 1.1754944e-38, %v1000
        %v1002 = vsel %vm999, %v1001, %v997
        %v1003 = vmul.f32 %v823, %v1002
        %v1004 = vrcp.pop %v889
        %v1005 = vmul.f32 %v889, %v1004
        %v1006 = vsub.f32 1.0, %v1005
        %v1007 = vmul.f32 %v1004, %v1006
        %v1008 = vadd.f32 %v1004, %v1007
        %vm1009 = vweird.f32 %v889
        %vm1010 = vweird.f32 %v1004
        %vm1011 = vmor %vm1009, %vm1010
        %v1012 = vsel %vm1011, %v1004, %v1008
        %v1013 = vand.u32 2147483647, %v889
        %vm1014 = vcmp.eq.f32.partialorder %v1013, 8.507059e+37
        %v1015 = vand.u32 %v889, 2147483648
        %v1016 = vor.u32 1.1754944e-38, %v1015
        %v1017 = vsel %vm1014, %v1016, %v1012
        %v1018 = vmul.f32 %v825, %v1017
        %v1019 = vrcp.pop %v891
        %v1020 = vmul.f32 %v891, %v1019
        %v1021 = vsub.f32 1.0, %v1020
        %v1022 = vmul.f32 %v1019, %v1021
        %v1023 = vadd.f32 %v1019, %v1022
        %vm1024 = vweird.f32 %v891
        %vm1025 = vweird.f32 %v1019
        %vm1026 = vmor %vm1024, %vm1025
        %v1027 = vsel %vm1026, %v1019, %v1023
        %v1028 = vand.u32 2147483647, %v891
        %vm1029 = vcmp.eq.f32.partialorder %v1028, 8.507059e+37
        %v1030 = vand.u32 %v891, 2147483648
        %v1031 = vor.u32 1.1754944e-38, %v1030
        %v1032 = vsel %vm1029, %v1031, %v1027
        %v1033 = vmul.f32 %v827, %v1032
        %v1034 = vrcp.pop %v893
        %v1035 = vmul.f32 %v893, %v1034
        %v1036 = vsub.f32 1.0, %v1035
        %v1037 = vmul.f32 %v1034, %v1036
        %v1038 = vadd.f32 %v1034, %v1037
        %vm1039 = vweird.f32 %v893
        %vm1040 = vweird.f32 %v1034
        %vm1041 = vmor %vm1039, %vm1040
        %v1042 = vsel %vm1041, %v1034, %v1038
        %v1043 = vand.u32 2147483647, %v893
        %vm1044 = vcmp.eq.f32.partialorder %v1043, 8.507059e+37
        %v1045 = vand.u32 %v893, 2147483648
        %v1046 = vor.u32 1.1754944e-38, %v1045
        %v1047 = vsel %vm1044, %v1046, %v1042
        %v1048 = vmul.f32 %v829, %v1047
        %v1049 = vrcp.pop %v895
        %v1050 = vmul.f32 %v895, %v1049
        %v1051 = vsub.f32 1.0, %v1050
        %v1052 = vmul.f32 %v1049, %v1051
        %v1053 = vadd.f32 %v1049, %v1052
        %vm1054 = vweird.f32 %v895
        %vm1055 = vweird.f32 %v1049
        %vm1056 = vmor %vm1054, %vm1055
        %v1057 = vsel %vm1056, %v1049, %v1053
        %v1058 = vand.u32 2147483647, %v895
        %vm1059 = vcmp.eq.f32.partialorder %v1058, 8.507059e+37
        %v1060 = vand.u32 %v895, 2147483648
        %v1061 = vor.u32 1.1754944e-38, %v1060
        %v1062 = vsel %vm1059, %v1061, %v1057
        %v1063 = vmul.f32 %v831, %v1062
        %v1064 = vrcp.pop %v897
        %v1065 = vmul.f32 %v897, %v1064
        %v1066 = vsub.f32 1.0, %v1065
        %v1067 = vmul.f32 %v1064, %v1066
        %v1068 = vadd.f32 %v1064, %v1067
        %vm1069 = vweird.f32 %v897
        %vm1070 = vweird.f32 %v1064
        %vm1071 = vmor %vm1069, %vm1070
        %v1072 = vsel %vm1071, %v1064, %v1068
        %v1073 = vand.u32 2147483647, %v897
        %vm1074 = vcmp.eq.f32.partialorder %v1073, 8.507059e+37
        %v1075 = vand.u32 %v897, 2147483648
        %v1076 = vor.u32 1.1754944e-38, %v1075
        %v1077 = vsel %vm1074, %v1076, %v1072
        %v1078 = vmul.f32 %v833, %v1077
        %v1079 = vrcp.pop %v899
        %v1080 = vmul.f32 %v899, %v1079
        %v1081 = vsub.f32 1.0, %v1080
        %v1082 = vmul.f32 %v1079, %v1081
        %v1083 = vadd.f32 %v1079, %v1082
        %vm1084 = vweird.f32 %v899
        %vm1085 = vweird.f32 %v1079
        %vm1086 = vmor %vm1084, %vm1085
        %v1087 = vsel %vm1086, %v1079, %v1083
        %v1088 = vand.u32 2147483647, %v899
        %vm1089 = vcmp.eq.f32.partialorder %v1088, 8.507059e+37
        %v1090 = vand.u32 %v899, 2147483648
        %v1091 = vor.u32 1.1754944e-38, %v1090
        %v1092 = vsel %vm1089, %v1091, %v1087
        %v1093 = vmul.f32 %v835, %v1092
        %v1094 = vrcp.pop %v901
        %v1095 = vmul.f32 %v901, %v1094
        %v1096 = vsub.f32 1.0, %v1095
        %v1097 = vmul.f32 %v1094, %v1096
        %v1098 = vadd.f32 %v1094, %v1097
        %vm1099 = vweird.f32 %v901
        %vm1100 = vweird.f32 %v1094
        %vm1101 = vmor %vm1099, %vm1100
        %v1102 = vsel %vm1101, %v1094, %v1098
        %v1103 = vand.u32 2147483647, %v901
        %vm1104 = vcmp.eq.f32.partialorder %v1103, 8.507059e+37
        %v1105 = vand.u32 %v901, 2147483648
        %v1106 = vor.u32 1.1754944e-38, %v1105
        %v1107 = vsel %vm1104, %v1106, %v1102
        %v1108 = vmul.f32 %v837, %v1107
        %v1109 = vrcp.pop %v903
        %v1110 = vmul.f32 %v903, %v1109
        %v1111 = vsub.f32 1.0, %v1110
        %v1112 = vmul.f32 %v1109, %v1111
        %v1113 = vadd.f32 %v1109, %v1112
        %vm1114 = vweird.f32 %v903
        %vm1115 = vweird.f32 %v1109
        %vm1116 = vmor %vm1114, %vm1115
        %v1117 = vsel %vm1116, %v1109, %v1113
        %v1118 = vand.u32 2147483647, %v903
        %vm1119 = vcmp.eq.f32.partialorder %v1118, 8.507059e+37
        %v1120 = vand.u32 %v903, 2147483648
        %v1121 = vor.u32 1.1754944e-38, %v1120
        %v1122 = vsel %vm1119, %v1121, %v1117
        %v1123 = vmul.f32 %v839, %v1122
        %v1124 = vrcp.pop %v905
        %v1125 = vmul.f32 %v905, %v1124
        %v1126 = vsub.f32 1.0, %v1125
        %v1127 = vmul.f32 %v1124, %v1126
        %v1128 = vadd.f32 %v1124, %v1127
        %vm1129 = vweird.f32 %v905
        %vm1130 = vweird.f32 %v1124
        %vm1131 = vmor %vm1129, %vm1130
        %v1132 = vsel %vm1131, %v1124, %v1128
        %v1133 = vand.u32 2147483647, %v905
        %vm1134 = vcmp.eq.f32.partialorder %v1133, 8.507059e+37
        %v1135 = vand.u32 %v905, 2147483648
        %v1136 = vor.u32 1.1754944e-38, %v1135
        %v1137 = vsel %vm1134, %v1136, %v1132
        %v1138 = vmul.f32 %v841, %v1137
        %v1139 = vrcp.pop %v907
        %v1140 = vmul.f32 %v907, %v1139
        %v1141 = vsub.f32 1.0, %v1140
        %v1142 = vmul.f32 %v1139, %v1141
        %v1143 = vadd.f32 %v1139, %v1142
        %vm1144 = vweird.f32 %v907
        %vm1145 = vweird.f32 %v1139
        %vm1146 = vmor %vm1144, %vm1145
        %v1147 = vsel %vm1146, %v1139, %v1143
        %v1148 = vand.u32 2147483647, %v907
        %vm1149 = vcmp.eq.f32.partialorder %v1148, 8.507059e+37
        %v1150 = vand.u32 %v907, 2147483648
        %v1151 = vor.u32 1.1754944e-38, %v1150
        %v1152 = vsel %vm1149, %v1151, %v1147
        %v1153 = vmul.f32 %v843, %v1152
        %v1154 = vrcp.pop %v909
        %v1155 = vmul.f32 %v909, %v1154
        %v1156 = vsub.f32 1.0, %v1155
        %v1157 = vmul.f32 %v1154, %v1156
        %v1158 = vadd.f32 %v1154, %v1157
        %vm1159 = vweird.f32 %v909
        %vm1160 = vweird.f32 %v1154
        %vm1161 = vmor %vm1159, %vm1160
        %v1162 = vsel %vm1161, %v1154, %v1158
        %v1163 = vand.u32 2147483647, %v909
        %vm1164 = vcmp.eq.f32.partialorder %v1163, 8.507059e+37
        %v1165 = vand.u32 %v909, 2147483648
        %v1166 = vor.u32 1.1754944e-38, %v1165
        %v1167 = vsel %vm1164, %v1166, %v1162
        %v1168 = vmul.f32 %v845, %v1167
        %v1169 = vrcp.pop %v911
        %v1170 = vmul.f32 %v911, %v1169
        %v1171 = vsub.f32 1.0, %v1170
        %v1172 = vmul.f32 %v1169, %v1171
        %v1173 = vadd.f32 %v1169, %v1172
        %vm1174 = vweird.f32 %v911
        %vm1175 = vweird.f32 %v1169
        %vm1176 = vmor %vm1174, %vm1175
        %v1177 = vsel %vm1176, %v1169, %v1173
        %v1178 = vand.u32 2147483647, %v911
        %vm1179 = vcmp.eq.f32.partialorder %v1178, 8.507059e+37
        %v1180 = vand.u32 %v911, 2147483648
        %v1181 = vor.u32 1.1754944e-38, %v1180
        %v1182 = vsel %vm1179, %v1181, %v1177
        %v1183 = vmul.f32 %v847, %v1182
        %v1184 = vrcp.pop %v913
        %v1185 = vmul.f32 %v913, %v1184
        %v1186 = vsub.f32 1.0, %v1185
        %v1187 = vmul.f32 %v1184, %v1186
        %v1188 = vadd.f32 %v1184, %v1187
        %vm1189 = vweird.f32 %v913
        %vm1190 = vweird.f32 %v1184
        %vm1191 = vmor %vm1189, %vm1190
        %v1192 = vsel %vm1191, %v1184, %v1188
        %v1193 = vand.u32 2147483647, %v913
        %vm1194 = vcmp.eq.f32.partialorder %v1193, 8.507059e+37
        %v1195 = vand.u32 %v913, 2147483648
        %v1196 = vor.u32 1.1754944e-38, %v1195
        %v1197 = vsel %vm1194, %v1196, %v1192
        %v1198 = vmul.f32 %v849, %v1197
        %v1199 = vrcp.pop %v915
        %v1200 = vmul.f32 %v915, %v1199
        %v1201 = vsub.f32 1.0, %v1200
        %v1202 = vmul.f32 %v1199, %v1201
        %v1203 = vadd.f32 %v1199, %v1202
        %vm1204 = vweird.f32 %v915
        %vm1205 = vweird.f32 %v1199
        %vm1206 = vmor %vm1204, %vm1205
        %v1207 = vsel %vm1206, %v1199, %v1203
        %v1208 = vand.u32 2147483647, %v915
        %vm1209 = vcmp.eq.f32.partialorder %v1208, 8.507059e+37
        %v1210 = vand.u32 %v915, 2147483648
        %v1211 = vor.u32 1.1754944e-38, %v1210
        %v1212 = vsel %vm1209, %v1211, %v1207
        %v1213 = vmul.f32 %v851, %v1212
        %v1214 = vrcp.pop %v917
        %v1215 = vmul.f32 %v917, %v1214
        %v1216 = vsub.f32 1.0, %v1215
        %v1217 = vmul.f32 %v1214, %v1216
        %v1218 = vadd.f32 %v1214, %v1217
        %vm1219 = vweird.f32 %v917
        %vm1220 = vweird.f32 %v1214
        %vm1221 = vmor %vm1219, %vm1220
        %v1222 = vsel %vm1221, %v1214, %v1218
        %v1223 = vand.u32 2147483647, %v917
        %vm1224 = vcmp.eq.f32.partialorder %v1223, 8.507059e+37
        %v1225 = vand.u32 %v917, 2147483648
        %v1226 = vor.u32 1.1754944e-38, %v1225
        %v1227 = vsel %vm1224, %v1226, %v1222
        %v1228 = vmul.f32 %v853, %v1227
        %v1229 = vrcp.pop %v919
        %v1230 = vmul.f32 %v919, %v1229
        %v1231 = vsub.f32 1.0, %v1230
        %v1232 = vmul.f32 %v1229, %v1231
        %v1233 = vadd.f32 %v1229, %v1232
        %vm1234 = vweird.f32 %v919
        %vm1235 = vweird.f32 %v1229
        %vm1236 = vmor %vm1234, %vm1235
        %v1237 = vsel %vm1236, %v1229, %v1233
        %v1238 = vand.u32 2147483647, %v919
        %vm1239 = vcmp.eq.f32.partialorder %v1238, 8.507059e+37
        %v1240 = vand.u32 %v919, 2147483648
        %v1241 = vor.u32 1.1754944e-38, %v1240
        %v1242 = vsel %vm1239, %v1241, %v1237
        %v1243 = vmul.f32 %v855, %v1242
        %v1244 = vrcp.pop %v921
        %v1245 = vmul.f32 %v921, %v1244
        %v1246 = vsub.f32 1.0, %v1245
        %v1247 = vmul.f32 %v1244, %v1246
        %v1248 = vadd.f32 %v1244, %v1247
        %vm1249 = vweird.f32 %v921
        %vm1250 = vweird.f32 %v1244
        %vm1251 = vmor %vm1249, %vm1250
        %v1252 = vsel %vm1251, %v1244, %v1248
        %v1253 = vand.u32 2147483647, %v921
        %vm1254 = vcmp.eq.f32.partialorder %v1253, 8.507059e+37
        %v1255 = vand.u32 %v921, 2147483648
        %v1256 = vor.u32 1.1754944e-38, %v1255
        %v1257 = vsel %vm1254, %v1256, %v1252
        %v1258 = vmul.f32 %v857, %v1257
        %v1259 = vrcp.pop %v923
        %v1260 = vmul.f32 %v923, %v1259
        %v1261 = vsub.f32 1.0, %v1260
        %v1262 = vmul.f32 %v1259, %v1261
        %v1263 = vadd.f32 %v1259, %v1262
        %vm1264 = vweird.f32 %v923
        %vm1265 = vweird.f32 %v1259
        %vm1266 = vmor %vm1264, %vm1265
        %v1267 = vsel %vm1266, %v1259, %v1263
        %v1268 = vand.u32 2147483647, %v923
        %vm1269 = vcmp.eq.f32.partialorder %v1268, 8.507059e+37
        %v1270 = vand.u32 %v923, 2147483648
        %v1271 = vor.u32 1.1754944e-38, %v1270
        %v1272 = vsel %vm1269, %v1271, %v1267
        %v1273 = vmul.f32 %v859, %v1272
        %v1274 = vrcp.pop %v925
        %v1275 = vmul.f32 %v925, %v1274
        %v1276 = vsub.f32 1.0, %v1275
        %v1277 = vmul.f32 %v1274, %v1276
        %v1278 = vadd.f32 %v1274, %v1277
        %vm1279 = vweird.f32 %v925
        %vm1280 = vweird.f32 %v1274
        %vm1281 = vmor %vm1279, %vm1280
        %v1282 = vsel %vm1281, %v1274, %v1278
        %v1283 = vand.u32 2147483647, %v925
        %vm1284 = vcmp.eq.f32.partialorder %v1283, 8.507059e+37
        %v1285 = vand.u32 %v925, 2147483648
        %v1286 = vor.u32 1.1754944e-38, %v1285
        %v1287 = vsel %vm1284, %v1286, %v1282
        %v1288 = vmul.f32 %v861, %v1287
        %v1289 = vrcp.pop %v927
        %v1290 = vmul.f32 %v927, %v1289
        %v1291 = vsub.f32 1.0, %v1290
        %v1292 = vmul.f32 %v1289, %v1291
        %v1293 = vadd.f32 %v1289, %v1292
        %vm1294 = vweird.f32 %v927
        %vm1295 = vweird.f32 %v1289
        %vm1296 = vmor %vm1294, %vm1295
        %v1297 = vsel %vm1296, %v1289, %v1293
        %v1298 = vand.u32 2147483647, %v927
        %vm1299 = vcmp.eq.f32.partialorder %v1298, 8.507059e+37
        %v1300 = vand.u32 %v927, 2147483648
        %v1301 = vor.u32 1.1754944e-38, %v1300
        %v1302 = vsel %vm1299, %v1301, %v1297
        %v1303 = vmul.f32 %v863, %v1302
        %v1304 = vrcp.pop %v929
        %v1305 = vmul.f32 %v929, %v1304
        %v1306 = vsub.f32 1.0, %v1305
        %v1307 = vmul.f32 %v1304, %v1306
        %v1308 = vadd.f32 %v1304, %v1307
        %vm1309 = vweird.f32 %v929
        %vm1310 = vweird.f32 %v1304
        %vm1311 = vmor %vm1309, %vm1310
        %v1312 = vsel %vm1311, %v1304, %v1308
        %v1313 = vand.u32 2147483647, %v929
        %vm1314 = vcmp.eq.f32.partialorder %v1313, 8.507059e+37
        %v1315 = vand.u32 %v929, 2147483648
        %v1316 = vor.u32 1.1754944e-38, %v1315
        %v1317 = vsel %vm1314, %v1316, %v1312
        %v1318 = vmul.f32 %v865, %v1317
        %v1319 = vrcp.pop %v931
        %v1320 = vmul.f32 %v931, %v1319
        %v1321 = vsub.f32 1.0, %v1320
        %v1322 = vmul.f32 %v1319, %v1321
        %v1323 = vadd.f32 %v1319, %v1322
        %vm1324 = vweird.f32 %v931
        %vm1325 = vweird.f32 %v1319
        %vm1326 = vmor %vm1324, %vm1325
        %v1327 = vsel %vm1326, %v1319, %v1323
        %v1328 = vand.u32 2147483647, %v931
        %vm1329 = vcmp.eq.f32.partialorder %v1328, 8.507059e+37
        %v1330 = vand.u32 %v931, 2147483648
        %v1331 = vor.u32 1.1754944e-38, %v1330
        %v1332 = vsel %vm1329, %v1331, %v1327
        %v1333 = vmul.f32 %v867, %v1332
        %v1334 = vrcp.pop %v933
        %v1335 = vmul.f32 %v933, %v1334
        %v1336 = vsub.f32 1.0, %v1335
        %v1337 = vmul.f32 %v1334, %v1336
        %v1338 = vadd.f32 %v1334, %v1337
        %vm1339 = vweird.f32 %v933
        %vm1340 = vweird.f32 %v1334
        %vm1341 = vmor %vm1339, %vm1340
        %v1342 = vsel %vm1341, %v1334, %v1338
        %v1343 = vand.u32 2147483647, %v933
        %vm1344 = vcmp.eq.f32.partialorder %v1343, 8.507059e+37
        %v1345 = vand.u32 %v933, 2147483648
        %v1346 = vor.u32 1.1754944e-38, %v1345
        %v1347 = vsel %vm1344, %v1346, %v1342
        %v1348 = vmul.f32 %v869, %v1347
        %v1349 = vrcp.pop %v935
        %v1350 = vmul.f32 %v935, %v1349
        %v1351 = vsub.f32 1.0, %v1350
        %v1352 = vmul.f32 %v1349, %v1351
        %v1353 = vadd.f32 %v1349, %v1352
        %vm1354 = vweird.f32 %v935
        %vm1355 = vweird.f32 %v1349
        %vm1356 = vmor %vm1354, %vm1355
        %v1357 = vsel %vm1356, %v1349, %v1353
        %v1358 = vand.u32 2147483647, %v935
        %vm1359 = vcmp.eq.f32.partialorder %v1358, 8.507059e+37
        %v1360 = vand.u32 %v935, 2147483648
        %v1361 = vor.u32 1.1754944e-38, %v1360
        %v1362 = vsel %vm1359, %v1361, %v1357
        %v1363 = vmul.f32 %v871, %v1362
        %v1364 = vrcp.pop %v937
        %v1365 = vmul.f32 %v937, %v1364
        %v1366 = vsub.f32 1.0, %v1365
        %v1367 = vmul.f32 %v1364, %v1366
        %v1368 = vadd.f32 %v1364, %v1367
        %vm1369 = vweird.f32 %v937
        %vm1370 = vweird.f32 %v1364
        %vm1371 = vmor %vm1369, %vm1370
        %v1372 = vsel %vm1371, %v1364, %v1368
        %v1373 = vand.u32 2147483647, %v937
        %vm1374 = vcmp.eq.f32.partialorder %v1373, 8.507059e+37
        %v1375 = vand.u32 %v937, 2147483648
        %v1376 = vor.u32 1.1754944e-38, %v1375
        %v1377 = vsel %vm1374, %v1376, %v1372
        %v1378 = vmul.f32 %v873, %v1377
        %v1379 = vrcp.pop %v939
        %v1380 = vmul.f32 %v939, %v1379
        %v1381 = vsub.f32 1.0, %v1380
        %v1382 = vmul.f32 %v1379, %v1381
        %v1383 = vadd.f32 %v1379, %v1382
        %vm1384 = vweird.f32 %v939
        %vm1385 = vweird.f32 %v1379
        %vm1386 = vmor %vm1384, %vm1385
        %v1387 = vsel %vm1386, %v1379, %v1383
        %v1388 = vand.u32 2147483647, %v939
        %vm1389 = vcmp.eq.f32.partialorder %v1388, 8.507059e+37
        %v1390 = vand.u32 %v939, 2147483648
        %v1391 = vor.u32 1.1754944e-38, %v1390
        %v1392 = vsel %vm1389, %v1391, %v1387
        %v1393 = vmul.f32 %v875, %v1392
        %v1394 = vrcp.pop %v941
        %v1395 = vmul.f32 %v941, %v1394
        %v1396 = vsub.f32 1.0, %v1395
        %v1397 = vmul.f32 %v1394, %v1396
        %v1398 = vadd.f32 %v1394, %v1397
        %vm1399 = vweird.f32 %v941
        %vm1400 = vweird.f32 %v1394
        %vm1401 = vmor %vm1399, %vm1400
        %v1402 = vsel %vm1401, %v1394, %v1398
        %v1403 = vand.u32 2147483647, %v941
        %vm1404 = vcmp.eq.f32.partialorder %v1403, 8.507059e+37
        %v1405 = vand.u32 %v941, 2147483648
        %v1406 = vor.u32 1.1754944e-38, %v1405
        %v1407 = vsel %vm1404, %v1406, %v1402
        %v1408 = vmul.f32 %v877, %v1407
        %v1409 = vrcp.pop %v943
        %v1410 = vmul.f32 %v943, %v1409
        %v1411 = vsub.f32 1.0, %v1410
        %v1412 = vmul.f32 %v1409, %v1411
        %v1413 = vadd.f32 %v1409, %v1412
        %vm1414 = vweird.f32 %v943
        %vm1415 = vweird.f32 %v1409
        %vm1416 = vmor %vm1414, %vm1415
        %v1417 = vsel %vm1416, %v1409, %v1413
        %v1418 = vand.u32 2147483647, %v943
        %vm1419 = vcmp.eq.f32.partialorder %v1418, 8.507059e+37
        %v1420 = vand.u32 %v943, 2147483648
        %v1421 = vor.u32 1.1754944e-38, %v1420
        %v1422 = vsel %vm1419, %v1421, %v1417
        %v1423 = vmul.f32 %v879, %v1422
        %1424 = vst [vmem:[%s137] sm:$0xff] %v958
        %1425 = vst [vmem:[%s137 + $0x8] sm:$0xff] %v973
        %1426 = vst [vmem:[%s137 + $0x10] sm:$0xff] %v988
        %1427 = vst [vmem:[%s137 + $0x18] sm:$0xff] %v1003
        %1428 = vst [vmem:[%s137 + $0x20] sm:$0xff] %v1018
        %1429 = vst [vmem:[%s137 + $0x28] sm:$0xff] %v1033
        %1430 = vst [vmem:[%s137 + $0x30] sm:$0xff] %v1048
        %1431 = vst [vmem:[%s137 + $0x38] sm:$0xff] %v1063
        %1432 = vst [vmem:[%s137 + $0x40] sm:$0xff] %v1078
        %1433 = vst [vmem:[%s137 + $0x48] sm:$0xff] %v1093
        %1434 = vst [vmem:[%s137 + $0x50] sm:$0xff] %v1108
        %1435 = vst [vmem:[%s137 + $0x58] sm:$0xff] %v1123
        %1436 = vst [vmem:[%s137 + $0x60] sm:$0xff] %v1138
        %1437 = vst [vmem:[%s137 + $0x68] sm:$0xff] %v1153
        %1438 = vst [vmem:[%s137 + $0x70] sm:$0xff] %v1168
        %1439 = vst [vmem:[%s137 + $0x78] sm:$0xff] %v1183
        %1440 = vst [vmem:[%s137 + $0x80] sm:$0xff] %v1198
        %1441 = vst [vmem:[%s137 + $0x88] sm:$0xff] %v1213
        %1442 = vst [vmem:[%s137 + $0x90] sm:$0xff] %v1228
        %1443 = vst [vmem:[%s137 + $0x98] sm:$0xff] %v1243
        %1444 = vst [vmem:[%s137 + $0xa0] sm:$0xff] %v1258
        %1445 = vst [vmem:[%s137 + $0xa8] sm:$0xff] %v1273
        %1446 = vst [vmem:[%s137 + $0xb0] sm:$0xff] %v1288
        %1447 = vst [vmem:[%s137 + $0xb8] sm:$0xff] %v1303
        %1448 = vst [vmem:[%s137 + $0xc0] sm:$0xff] %v1318
        %1449 = vst [vmem:[%s137 + $0xc8] sm:$0xff] %v1333
        %1450 = vst [vmem:[%s137 + $0xd0] sm:$0xff] %v1348
        %1451 = vst [vmem:[%s137 + $0xd8] sm:$0xff] %v1363
        %1452 = vst [vmem:[%s137 + $0xe0] sm:$0xff] %v1378
        %1453 = vst [vmem:[%s137 + $0xe8] sm:$0xff] %v1393
        %1454 = vst [vmem:[%s137 + $0xf0] sm:$0xff] %v1408
        %1455 = vst [vmem:[%s137 + $0xf8] sm:$0xff] %v1423
        %s1456 = sand.u32 %s71, 1
        %s1457 = scalar_lea.sflag [#allocation3], %s1456
        %s1458 = sand.u32 %s71, 1
        %s1459 = smul.addr %s1458, 256
        %s1460 = scalar_lea.vmem [#allocation2], %s1459
        // Predicated region
        $region29: #{tpu_custom_call.1} parent=27 // pred_check
          %p1461 = pneg %p81
        $region30: #{tpu_custom_call.1} parent=27 // pred_check_branch
          %1463 = sbr.rel (%p1461) target = $region32
        $region31: #{tpu_custom_call.1} parent=27 // pred_region
          %s1464 = smul.u32 32, %s16
          %1466 = vsyncadd %s1457, 0
          %s1467 = smul.addr %s1464, 8
          %s1468 = scalar_lea.hbm %s2, %s1467
          %s1469 = sshll.u32 %s1460, 4
          %s1470 = int_to_ptr.vmem [resolvable:$true] %s1469
          %s1471 = sshll.u32 %s1468, 4
          %s1472 = int_to_ptr.hbm [resolvable:$true] %s1471
          %1477 = dma.vmem_to_hbm [thread:$0]  %s1470, 4096, %s1472, %s1457, 128, 128, 8
        $region32: #{tpu_custom_call.1} parent=27 // pred_fallthru
          _
      $region28: #{tpu_custom_call.1} parent=5 // pred_fallthru
        _
      %p1478 = scmp.le.s32.totalorder 2, %s11
      // Predicated region
      $region33: #{tpu_custom_call.1} parent=5 // pred_check
        %p1479 = pneg %p1478
      $region34: #{tpu_custom_call.1} parent=5 // pred_check_branch
        %1481 = sbr.rel (%p1479) target = $region36
      $region35: #{tpu_custom_call.1} parent=5 // pred_region
        %s1482 = ssub.s32 %s11, 2
        // Predicated region
        $region37: #{tpu_custom_call.1} parent=35 // pred_check
          %p1483 = pneg %p87
        $region38: #{tpu_custom_call.1} parent=35 // pred_check_branch
          %1485 = sbr.rel (%p1483) target = $region40
        $region39: #{tpu_custom_call.1} parent=35 // pred_region
          %s1486 = sand.u32 %s72, 1
          %s1487 = scalar_lea.sflag [#allocation3], %s1486
          %s1488 = sand.u32 %s72, 1
          %s1489 = smul.addr %s1488, 256
          %s1490 = scalar_lea.vmem [#allocation2], %s1489
          %1492 = dma.done %s1487, 4096
        $region40: #{tpu_custom_call.1} parent=35 // pred_fallthru
          _
      $region36: #{tpu_custom_call.1} parent=5 // pred_fallthru
        _
    $region6: #{tpu_custom_call.1} parent=1 // loop_footer
      %s15 = sadd.s32 1, %s11
    $region7: #{tpu_custom_call.1} parent=1 // loop_footer_branch
      %10 = sbr.rel target = $region3
    $region8: #{tpu_custom_call.1} parent=1 // loop_exit
      _
    %1493 = vsyncpa [#allocation3], 1
    %s1494 = scalar_lea.sflag [#allocation3], 1
    %1495 = vsyncpa %s1494, 1

</llo_original>
